<compile_context>
chip_gen: v6e
topology: v6e:2x2x1
jax: 0.10.0
libtpu: 0.0.40
codegen_flags: <defaults>
</compile_context>

<pallas_src>
import functools
import math

import jax
import jax.numpy as jnp
from jax import lax
from jax.experimental import pallas as pl
from jax.experimental.pallas import tpu as pltpu

NEG = -1e30               # stands in for float('-inf') in masked_fill (same post-softmax result)
_VMEM_LIMIT = 48 * 1024 * 1024   # <= 64 MiB physical on v7x; plenty of headroom on v5e/v6e
BF16 = jnp.bfloat16


def _pick_tile(dim, candidates):
    """Largest candidate tile that divides `dim`; fall back to the full dim."""
    for c in candidates:
        if c <= dim and dim % c == 0:
            return c
    return dim


def _gelu_f32(x):
    # Exact (erf-based) GELU matching torch.nn.functional.gelu default.
    # erf via Abramowitz & Stegun 7.1.26 (|err| < 1.5e-7); kept as a polynomial
    # (guaranteed Mosaic lowering) rather than lax.erf.
    z = x * 0.7071067811865476
    a = jnp.abs(z)
    t = 1.0 / (1.0 + 0.3275911 * a)
    poly = t * (0.254829592 + t * (-0.284496736 + t * (1.421413741
             + t * (-1.453152027 + t * 1.061405429))))
    erf_a = 1.0 - poly * jnp.exp(-a * a)
    erf_z = jnp.where(z >= 0, erf_a, -erf_a)
    return 0.5 * x * (1.0 + erf_z)


# ----------------------------------------------------------------------------
# Tiled matmul kernels
# ----------------------------------------------------------------------------
def _matmul_kernel(x_ref, w_ref, b_ref, o_ref, acc_ref, *, act):
    @pl.when(pl.program_id(2) == 0)
    def _():
        acc_ref[...] = jnp.zeros_like(acc_ref)

    x = x_ref[...]
    if x.dtype != BF16:
        x = x.astype(BF16)
    acc_ref[...] += jnp.dot(x, w_ref[...], preferred_element_type=jnp.float32)

    @pl.when(pl.program_id(2) == pl.num_programs(2) - 1)
    def _():
        y = acc_ref[...] + b_ref[...]
        if act == "gelu":
            y = _gelu_f32(y)
        o_ref[...] = y.astype(o_ref.dtype)


def pallas_linear(x, w, b, act=None, out_dtype=jnp.float32):
    """x:(M,K) f32/bf16, w:(K,N) bf16, b:(N,) f32 -> act(x@w+b) in out_dtype (M,N)."""
    M, K = x.shape
    N = w.shape[1]
    tm = _pick_tile(M, (512, 256, 128, 64, 32, 16, 8))
    tn = _pick_tile(N, (512, 256, 128))
    tk = _pick_tile(K, (512, 256, 128))
    grid = (M // tm, N // tn, K // tk)
    return pl.pallas_call(
        functools.partial(_matmul_kernel, act=act),
        out_shape=jax.ShapeDtypeStruct((M, N), out_dtype),
        grid=grid,
        in_specs=[
            pl.BlockSpec((tm, tk), lambda i, j, k: (i, k)),
            pl.BlockSpec((tk, tn), lambda i, j, k: (k, j)),
            pl.BlockSpec((1, tn), lambda i, j, k: (0, j)),
        ],
        out_specs=pl.BlockSpec((tm, tn), lambda i, j, k: (i, j)),
        scratch_shapes=[pltpu.VMEM((tm, tn), jnp.float32)],
        compiler_params=pltpu.CompilerParams(
            dimension_semantics=("parallel", "parallel", "arbitrary"),
            vmem_limit_bytes=_VMEM_LIMIT),
    )(x, w, b.reshape(1, N))


def _matmul_res_ln_kernel(x_ref, w_ref, b_ref, r_ref, g_ref, bln_ref, o_ref, acc_ref):
    """Epilogue-fused: o = LayerNorm(residual + x @ w + b) * gamma + beta."""
    @pl.when(pl.program_id(1) == 0)
    def _():
        acc_ref[...] = jnp.zeros_like(acc_ref)

    x = x_ref[...]
    if x.dtype != BF16:
        x = x.astype(BF16)
    acc_ref[...] += jnp.dot(x, w_ref[...], preferred_element_type=jnp.float32)

    @pl.when(pl.program_id(1) == pl.num_programs(1) - 1)
    def _():
        h = acc_ref[...] + b_ref[...] + r_ref[...].astype(jnp.float32)
        mu = jnp.mean(h, axis=-1, keepdims=True)
        d = h - mu
        var = jnp.mean(d * d, axis=-1, keepdims=True)
        y = d * lax.rsqrt(var + 1e-5) * g_ref[...] + bln_ref[...]
        o_ref[...] = y.astype(o_ref.dtype)


def pallas_linear_add_ln(x, w, b, residual, gamma, beta, out_dtype=BF16):
    """LayerNorm(residual + x@w + b); output width must be the full LN feature dim."""
    M, K = x.shape
    N = w.shape[1]            # = d_model; N is NOT tiled so the row-wise LN is exact
    tm = _pick_tile(M, (512, 256, 128, 64, 32, 16, 8))
    tk = _pick_tile(K, (512, 256, 128))
    grid = (M // tm, K // tk)
    return pl.pallas_call(
        _matmul_res_ln_kernel,
        out_shape=jax.ShapeDtypeStruct((M, N), out_dtype),
        grid=grid,
        in_specs=[
            pl.BlockSpec((tm, tk), lambda i, k: (i, k)),
            pl.BlockSpec((tk, N), lambda i, k: (k, 0)),
            pl.BlockSpec((1, N), lambda i, k: (0, 0)),
            pl.BlockSpec((tm, N), lambda i, k: (i, 0)),
            pl.BlockSpec((1, N), lambda i, k: (0, 0)),
            pl.BlockSpec((1, N), lambda i, k: (0, 0)),
        ],
        out_specs=pl.BlockSpec((tm, N), lambda i, k: (i, 0)),
        scratch_shapes=[pltpu.VMEM((tm, N), jnp.float32)],
        compiler_params=pltpu.CompilerParams(
            dimension_semantics=("parallel", "arbitrary"),
            vmem_limit_bytes=_VMEM_LIMIT),
    )(x, w, b.reshape(1, N), residual, gamma.reshape(1, N), beta.reshape(1, N))


# ----------------------------------------------------------------------------
# Flash-style attention: grid = (N*H, Lq tiles, Lk tiles), online softmax,
# lane-dense per-(b, q-tile) output store, masks built in-kernel.
# Softmax scale is pre-folded into the Q projection weights.
# ----------------------------------------------------------------------------
def _flash_attn_kernel(q_ref, kt_ref, v_ref, am_ref, kp_ref, o_ref,
                       m_sc, l_sc, acc_sc):
    ki = pl.program_id(2)

    @pl.when(ki == 0)
    def _():
        m_sc[...] = jnp.full_like(m_sc, -jnp.inf)
        l_sc[...] = jnp.zeros_like(l_sc)
        acc_sc[...] = jnp.zeros_like(acc_sc)

    q = q_ref[0]          # (tq, Dh)  bf16, scale already folded into W_q
    kt = kt_ref[0]        # (Dh, tk)  bf16, pre-transposed -> canonical MXU feed
    v = v_ref[0]          # (tk, Dh)  bf16
    s = jnp.dot(q, kt, preferred_element_type=jnp.float32)      # (tq, tk) f32
    s = s + am_ref[...] + kp_ref[0]                              # additive masks

    m_prev = m_sc[...]
    m_new = jnp.maximum(m_prev, jnp.max(s, axis=-1, keepdims=True))
    alpha = jnp.exp(m_prev - m_new)
    p = jnp.exp(s - m_new)
    l_sc[...] = alpha * l_sc[...] + jnp.sum(p, axis=-1, keepdims=True)
    acc_sc[...] = alpha * acc_sc[...] + jnp.dot(
        p.astype(BF16), v, preferred_element_type=jnp.float32)
    m_sc[...] = m_new

    @pl.when(ki == pl.num_programs(2) - 1)
    def _():
        inv_l = pl.reciprocal(l_sc[...], approx=True)
        o_ref[0] = (acc_sc[...] * inv_l).astype(o_ref.dtype)


def flash_mha(q_h, kt_h, v_h, attn_mask, kp, n_head):
    """q_h:(NH,Lq,Dh), kt_h:(NH,Dh,Lk), v_h:(NH,Lk,Dh) bf16;
    attn_mask:(Lq,Lk) f32 additive; kp:(N,1,Lk) f32 additive.  Returns (NH,Lq,Dh) bf16."""
    NH, Lq, Dh = q_h.shape
    Lk = v_h.shape[1]
    tq = _pick_tile(Lq, (256, 128))
    tk = _pick_tile(Lk, (256, 128))
    grid = (NH, Lq // tq, Lk // tk)
    return pl.pallas_call(
        _flash_attn_kernel,
        out_shape=jax.ShapeDtypeStruct((NH, Lq, Dh), BF16),
        grid=grid,
        in_specs=[
            pl.BlockSpec((1, tq, Dh), lambda b, qi, ki: (b, qi, 0)),
            pl.BlockSpec((1, Dh, tk), lambda b, qi, ki: (b, 0, ki)),
            pl.BlockSpec((1, tk, Dh), lambda b, qi, ki: (b, ki, 0)),
            pl.BlockSpec((tq, tk), lambda b, qi, ki: (qi, ki)),
            pl.BlockSpec((1, 1, tk), lambda b, qi, ki: (b // n_head, 0, ki)),
        ],
        out_specs=pl.BlockSpec((1, tq, Dh), lambda b, qi, ki: (b, qi, 0)),
        scratch_shapes=[pltpu.VMEM((tq, 1), jnp.float32),
                        pltpu.VMEM((tq, 1), jnp.float32),
                        pltpu.VMEM((tq, Dh), jnp.float32)],
        compiler_params=pltpu.CompilerParams(
            dimension_semantics=("parallel", "parallel", "arbitrary"),
            vmem_limit_bytes=_VMEM_LIMIT),
    )(q_h, kt_h, v_h, attn_mask, kp)


# ---- head layout plumbing (wrapper-side XLA reshapes/transposes) -------------
def _split_heads(x2d, N, L, n_head, transpose_last=False):
    E = x2d.shape[-1]
    Dh = E // n_head
    x = x2d.reshape(N, L, n_head, Dh)
    if transpose_last:
        return jnp.transpose(x, (0, 2, 3, 1)).reshape(N * n_head, Dh, L)   # (NH, Dh, L)
    return jnp.transpose(x, (0, 2, 1, 3)).reshape(N * n_head, L, Dh)       # (NH, L, Dh)


def _merge_heads(o, N, L, n_head):
    Dh = o.shape[-1]
    return jnp.transpose(o.reshape(N, n_head, L, Dh), (0, 2, 1, 3)).reshape(N * L, n_head * Dh)


def self_attention_heads(x3, p, n_head, attn_mask, kp):
    """Fused QKV projection + flash attention; returns pre-out-proj (N*L, E) bf16."""
    N, L, E = x3.shape
    qkv = pallas_linear(x3.reshape(N * L, E), p["w_qkv"], p["b_qkv"], out_dtype=BF16)
    q = _split_heads(qkv[:, :E], N, L, n_head)
    kt = _split_heads(qkv[:, E:2 * E], N, L, n_head, transpose_last=True)
    v = _split_heads(qkv[:, 2 * E:], N, L, n_head)
    o = flash_mha(q, kt, v, attn_mask, kp, n_head)
    return _merge_heads(o, N, L, n_head)


# ----------------------------------------------------------------------------
# Transformer layers (post-norm, GELU, dropout = identity in eval)
# ----------------------------------------------------------------------------
def encoder_layer(x, p, n_head, zero_mask, kp_src):
    N, L, E = x.shape
    x2 = x.reshape(N * L, E)
    sa = p["self_attn"]
    a = self_attention_heads(x, sa, n_head, zero_mask, kp_src)              # (N*L, E) bf16
    x2 = pallas_linear_add_ln(a, sa["w_o"], sa["b_o"], x2, p["norm1_g"], p["norm1_b"])
    h = pallas_linear(x2, p["w1"], p["b1"], act="gelu", out_dtype=BF16)     # fused bias+GELU
    x2 = pallas_linear_add_ln(h, p["w2"], p["b2"], x2, p["norm2_g"], p["norm2_b"])
    return x2.reshape(N, L, E)


def decoder_layer(tgt, kt_mem, v_mem, p, p_self, p_cross, n_head,
                  tgt_mask_add, zero_mask_cross, kp_tgt, kp_mem):
    N, Lt, E = tgt.shape
    t2 = tgt.reshape(N * Lt, E)
    # self attention + fused out-proj/residual/LN1
    a = self_attention_heads(tgt, p_self, n_head, tgt_mask_add, kp_tgt)
    t2 = pallas_linear_add_ln(a, p_self["w_o"], p_self["b_o"], t2, p["norm1_g"], p["norm1_b"])
    # cross attention (K/V of `memory` precomputed once outside the layer loop)
    q = _split_heads(pallas_linear(t2, p_cross["w_q"], p_cross["b_q"], out_dtype=BF16),
                     N, Lt, n_head)
    a = _merge_heads(flash_mha(q, kt_mem, v_mem, zero_mask_cross, kp_mem, n_head), N, Lt, n_head)
    t2 = pallas_linear_add_ln(a, p_cross["w_o"], p_cross["b_o"], t2, p["norm2_g"], p["norm2_b"])
    # FFN with fused residual/LN3
    h = pallas_linear(t2, p["w1"], p["b1"], act="gelu", out_dtype=BF16)
    t2 = pallas_linear_add_ln(h, p["w2"], p["b2"], t2, p["norm3_g"], p["norm3_b"])
    return t2.reshape(N, Lt, E)


def sinusoidal_pe(max_len, d_model):
    pos = jnp.arange(max_len, dtype=jnp.float32)[:, None]
    i = jnp.arange(0, d_model, 2, dtype=jnp.float32)[None, :]
    angle = pos / jnp.power(10000.0, i / d_model)
    pe = jnp.zeros((max_len, d_model), jnp.float32)
    pe = pe.at[:, 0::2].set(jnp.sin(angle))
    pe = pe.at[:, 1::2].set(jnp.cos(angle))
    return pe


def embed(tokens, emb_table, proj_w, proj_b, pe):
    # TODO(synk): TransformerEmbedding / TransformerEmbedding_bilinear are not defined
    # in the reference source; stand-in = token embedding -> linear -> + sinusoidal PE
    # (king_id is ignored here).
    N, L = tokens.shape
    d_emb = emb_table.shape[1]
    e = emb_table[tokens]                                       # XLA gather (glue)
    x = pallas_linear(e.reshape(N * L, d_emb), proj_w, proj_b)
    d_model = x.shape[-1]
    return (x.reshape(N, L, d_model) + pe[None, :L, :]).astype(BF16)


def transformer_forward(params, cfg, src_tokens, trg_tokens, king_id, tgt_mask,
                        non_pad_position=None):
    pad_idx = cfg["pad_idx"]
    n_head = cfg["n_head"]
    E = cfg["d_model"]
    N, Ls = src_tokens.shape
    Lt = trg_tokens.shape[1]

    # additive key-padding masks (0 / NEG), kept f32
    kp_src = jnp.where(src_tokens == pad_idx, NEG, 0.0).astype(jnp.float32).reshape(N, 1, Ls)
    kp_tgt = jnp.where(trg_tokens == pad_idx, NEG, 0.0).astype(jnp.float32).reshape(N, 1, Lt)
    zero_ss = jnp.zeros((Ls, Ls), jnp.float32)
    zero_ts = jnp.zeros((Lt, Ls), jnp.float32)
    tgt_mask_add = tgt_mask.astype(jnp.float32)

    enc = embed(src_tokens, params["src_emb"], params["src_proj_w"],
                params["src_proj_b"], params["pe"])              # (N, Ls, E) bf16
    dec = embed(trg_tokens, params["trg_emb"], params["trg_proj_w"],
                params["trg_proj_b"], params["pe"])              # (N, Lt, E) bf16

    for p in params["encoder_layers"]:
        enc = encoder_layer(enc, p, n_head, zero_ss, kp_src)

    # Cross-attention K/V projection depends only on `enc` and the SHARED cross-attn
    # weights (same MultiheadAttention module reused by every decoder layer in the
    # reference), so it is hoisted out of the decoder loop and computed once.
    p_cross = params["dec_cross_attn"]
    kv = pallas_linear(enc.reshape(N * Ls, E), p_cross["w_kv"], p_cross["b_kv"], out_dtype=BF16)
    kt_mem = _split_heads(kv[:, :E], N, Ls, n_head, transpose_last=True)   # (NH, Dh, Ls)
    v_mem = _split_heads(kv[:, E:], N, Ls, n_head)                         # (NH, Ls, Dh)

    for p in params["decoder_layers"]:
        dec = decoder_layer(dec, kt_mem, v_mem, p,
                            params["dec_self_attn"], p_cross,
                            n_head, tgt_mask_add, zero_ts, kp_tgt, kp_src)

    if non_pad_position is not None:
        out = dec[non_pad_position]                              # (num_tokens, E)
        h = pallas_linear(out, params["out1_w"], params["out1_b"], act="gelu", out_dtype=BF16)
        return pallas_linear(h, params["out2_w"], params["out2_b"], out_dtype=jnp.float32)
    out = dec.reshape(N * Lt, E)
    h = pallas_linear(out, params["out1_w"], params["out1_b"], act="gelu", out_dtype=BF16)
    logits = pallas_linear(h, params["out2_w"], params["out2_b"], out_dtype=jnp.float32)
    return logits.reshape(N, Lt, -1)


# ----------------------------------------------------------------------------
# Deterministic parameter init (matmul weights stored bf16, biases/LN in f32)
# ----------------------------------------------------------------------------
def dense_params(key, in_dim, out_dim, scale=0.05):
    k1, k2 = jax.random.split(key)
    w = jax.random.normal(k1, (in_dim, out_dim), jnp.float32) * scale
    b = jax.random.normal(k2, (out_dim,), jnp.float32) * scale
    return w, b


def mha_params(key, d_model, n_head):
    ks = jax.random.split(key, 4)
    wq, bq = dense_params(ks[0], d_model, d_model)
    wk, bk = dense_params(ks[1], d_model, d_model)
    wv, bv = dense_params(ks[2], d_model, d_model)
    wo, bo = dense_params(ks[3], d_model, d_model)
    scale = (d_model // n_head) ** -0.5
    wq_s, bq_s = wq * scale, bq * scale   # softmax 1/sqrt(Dh) folded into Q projection
    return dict(
        w_qkv=jnp.concatenate([wq_s, wk, wv], axis=1).astype(BF16),   # fused QKV
        b_qkv=jnp.concatenate([bq_s, bk, bv], axis=0),
        w_q=wq_s.astype(BF16), b_q=bq_s,
        w_kv=jnp.concatenate([wk, wv], axis=1).astype(BF16),          # fused KV (cross attn)
        b_kv=jnp.concatenate([bk, bv], axis=0),
        w_o=wo.astype(BF16), b_o=bo)


def enc_layer_params(key, d_model, d_ff, n_head):
    ks = jax.random.split(key, 3)
    w1, b1 = dense_params(ks[0], d_model, d_ff)
    w2, b2 = dense_params(ks[1], d_ff, d_model)
    return dict(self_attn=mha_params(ks[2], d_model, n_head),
                w1=w1.astype(BF16), b1=b1,
                w2=w2.astype(BF16), b2=b2,
                norm1_g=jnp.ones((d_model,), jnp.float32),
                norm1_b=jnp.zeros((d_model,), jnp.float32),
                norm2_g=jnp.ones((d_model,), jnp.float32),
                norm2_b=jnp.zeros((d_model,), jnp.float32))


def dec_layer_params(key, d_model, d_ff):
    ks = jax.random.split(key, 2)
    w1, b1 = dense_params(ks[0], d_model, d_ff)
    w2, b2 = dense_params(ks[1], d_ff, d_model)
    return dict(w1=w1.astype(BF16), b1=b1,
                w2=w2.astype(BF16), b2=b2,
                norm1_g=jnp.ones((d_model,), jnp.float32),
                norm1_b=jnp.zeros((d_model,), jnp.float32),
                norm2_g=jnp.ones((d_model,), jnp.float32),
                norm2_b=jnp.zeros((d_model,), jnp.float32),
                norm3_g=jnp.ones((d_model,), jnp.float32),
                norm3_b=jnp.zeros((d_model,), jnp.float32))


def init_params(key, cfg):
    d_model, d_emb, d_ff = cfg["d_model"], cfg["d_embedding"], cfg["dim_feedforward"]
    n_head = cfg["n_head"]
    keys = jax.random.split(key, 12)
    src_proj_w, src_proj_b = dense_params(keys[2], d_emb, d_model)
    trg_proj_w, trg_proj_b = dense_params(keys[3], d_emb, d_model)
    out1_w, out1_b = dense_params(keys[4], d_model, d_emb)
    out2_w, out2_b = dense_params(keys[5], d_emb, cfg["trg_vocab"])
    enc_keys = jax.random.split(keys[6], cfg["num_encoder_layer"])
    dec_keys = jax.random.split(keys[7], cfg["num_decoder_layer"])
    return dict(
        src_emb=jax.random.normal(keys[0], (cfg["src_vocab"], d_emb), jnp.float32) * 0.05,
        trg_emb=jax.random.normal(keys[1], (cfg["trg_vocab"], d_emb), jnp.float32) * 0.05,
        src_proj_w=src_proj_w.astype(BF16), src_proj_b=src_proj_b,
        trg_proj_w=trg_proj_w.astype(BF16), trg_proj_b=trg_proj_b,
        out1_w=out1_w.astype(BF16), out1_b=out1_b,
        out2_w=out2_w.astype(BF16), out2_b=out2_b,
        pe=sinusoidal_pe(cfg["max_len"], d_model),
        encoder_layers=[enc_layer_params(k, d_model, d_ff, n_head) for k in enc_keys],
        decoder_layers=[dec_layer_params(k, d_model, d_ff) for k in dec_keys],
        dec_self_attn=mha_params(keys[8], d_model, n_head),
        dec_cross_attn=mha_params(keys[9], d_model, n_head),
    )


# ----------------------------------------------------------------------------
# main
# ----------------------------------------------------------------------------
if __name__ == "__main__":
    cfg = dict(pad_idx=0, bos_idx=1, eos_idx=2, max_len=16,
               d_model=32, d_embedding=16, n_head=4, dim_feedforward=64,
               num_encoder_layer=2, num_decoder_layer=2,
               src_vocab=50, trg_vocab=50)

    B, L = 2, 8
    key = jax.random.PRNGKey(0)
    kp, ks, kt = jax.random.split(key, 3)

    params = init_params(kp, cfg)

    src_tokens = jax.random.randint(ks, (B, L), 3, cfg["src_vocab"], jnp.int32)
    trg_tokens = jax.random.randint(kt, (B, L), 3, cfg["trg_vocab"], jnp.int32)
    # inject bos / pad positions to exercise the padding masks
    src_tokens = src_tokens.at[0, -2:].set(cfg["pad_idx"])
    trg_tokens = trg_tokens.at[:, 0].set(cfg["bos_idx"])
    trg_tokens = trg_tokens.at[1, -1:].set(cfg["pad_idx"])

    # standard causal additive mask (0 allowed / very-negative disallowed)
    causal = jnp.where(
        jnp.arange(L)[None, :] <= jnp.arange(L)[:, None], 0.0, NEG
    ).astype(jnp.float32)

    king_id = jnp.zeros((B,), jnp.int32)  # unused by the stand-in embedding

    logits = transformer_forward(params, cfg, src_tokens, trg_tokens,
                                 king_id, causal, non_pad_position=None)
    logits = jax.block_until_ready(logits)

    assert logits.shape == (B, L, cfg["trg_vocab"])
    assert bool(jnp.all(jnp.isfinite(logits)))
    print("KERNEL_OK")
</pallas_src>

<mosaic_0001>
module attributes {stable_mosaic.version = 11 : i64} {
  func.func @_matmul_kernel(%arg0: i32, %arg1: i32, %arg2: i32, %arg3: memref<16x16xf32, #tpu.memory_space<vmem>>, %arg4: memref<16x32xbf16, #tpu.memory_space<vmem>>, %arg5: memref<1x32xf32, #tpu.memory_space<vmem>>, %arg6: memref<16x32xf32, #tpu.memory_space<vmem>>, %arg7: memref<16x32xf32, #tpu.memory_space<vmem>>) attributes {dimension_semantics = [#tpu.dimension_semantics<parallel>, #tpu.dimension_semantics<parallel>, #tpu.dimension_semantics<arbitrary>], iteration_bounds = array<i64: 1, 1, 1>, scalar_prefetch = 0 : i64, scratch_operands = 1 : i64, tpu.core_type = #tpu.core_type<tc>, window_params = [{transform_indices = @transform_0, window_bounds = array<i64: 16, 16>}, {transform_indices = @transform_1, window_bounds = array<i64: 16, 32>}, {transform_indices = @transform_2, window_bounds = array<i64: 1, 32>}, {transform_indices = @transform_3, window_bounds = array<i64: 16, 32>}]} {
    %c0_i32 = arith.constant 0 : i32
    %0 = arith.cmpi eq, %arg2, %c0_i32 : i32
    %1 = arith.extui %0 : i1 to i32
    %c0_i32_0 = arith.constant 0 : i32
    %2 = arith.cmpi ne, %1, %c0_i32_0 : i32
    scf.if %2 {
      %cst_10 = arith.constant 0.000000e+00 : f32
      %13 = vector.broadcast %cst_10 : f32 to vector<16x32xf32>
      %c0_11 = arith.constant 0 : index
      %c0_12 = arith.constant 0 : index
      %14 = vector.load %arg7[%c0_11, %c0_12] : memref<16x32xf32, #tpu.memory_space<vmem>>, vector<16x32xf32>
      tpu.vector_store %arg7[%c0_11, %c0_12], %13 {strides = array<i32>} : memref<16x32xf32, #tpu.memory_space<vmem>>, vector<16x32xf32>,
    } else {
    }
    %c0 = arith.constant 0 : index
    %c0_1 = arith.constant 0 : index
    %3 = vector.load %arg3[%c0, %c0_1] : memref<16x16xf32, #tpu.memory_space<vmem>>, vector<16x16xf32>
    %4 = arith.truncf %3 : vector<16x16xf32> to vector<16x16xbf16>
    %c0_2 = arith.constant 0 : index
    %c0_3 = arith.constant 0 : index
    %5 = vector.load %arg7[%c0_2, %c0_3] : memref<16x32xf32, #tpu.memory_space<vmem>>, vector<16x32xf32>
    %c0_4 = arith.constant 0 : index
    %c0_5 = arith.constant 0 : index
    %6 = vector.load %arg4[%c0_4, %c0_5] : memref<16x32xbf16, #tpu.memory_space<vmem>>, vector<16x32xbf16>
    %cst = arith.constant dense<0.000000e+00> : vector<16x32xf32>
    %7 = tpu.matmul %4, %6, %cst {dimension_numbers = #tpu.dot_dimension_numbers<[1], [0], [0], [1], [0, 0, 1, 1], [], []>} : vector<16x16xbf16>, vector<16x32xbf16>, vector<16x32xf32> -> vector<16x32xf32>
    %8 = arith.addf %5, %7 : vector<16x32xf32>
    %c0_6 = arith.constant 0 : index
    %c0_7 = arith.constant 0 : index
    %9 = vector.load %arg7[%c0_6, %c0_7] : memref<16x32xf32, #tpu.memory_space<vmem>>, vector<16x32xf32>
    tpu.vector_store %arg7[%c0_6, %c0_7], %8 {strides = array<i32>} : memref<16x32xf32, #tpu.memory_space<vmem>>, vector<16x32xf32>,
    %c0_i32_8 = arith.constant 0 : i32
    %10 = arith.cmpi eq, %arg2, %c0_i32_8 : i32
    %11 = arith.extui %10 : i1 to i32
    %c0_i32_9 = arith.constant 0 : i32
    %12 = arith.cmpi ne, %11, %c0_i32_9 : i32
    scf.if %12 {
      %c0_10 = arith.constant 0 : index
      %c0_11 = arith.constant 0 : index
      %13 = vector.load %arg7[%c0_10, %c0_11] : memref<16x32xf32, #tpu.memory_space<vmem>>, vector<16x32xf32>
      %c0_12 = arith.constant 0 : index
      %c0_13 = arith.constant 0 : index
      %14 = vector.load %arg5[%c0_12, %c0_13] : memref<1x32xf32, #tpu.memory_space<vmem>>, vector<1x32xf32>
      %15 = vector.broadcast %14 : vector<1x32xf32> to vector<16x32xf32>
      %16 = arith.addf %13, %15 : vector<16x32xf32>
      %c0_14 = arith.constant 0 : index
      %c0_15 = arith.constant 0 : index
      %17 = vector.load %arg6[%c0_14, %c0_15] : memref<16x32xf32, #tpu.memory_space<vmem>>, vector<16x32xf32>
      tpu.vector_store %arg6[%c0_14, %c0_15], %16 {strides = array<i32>} : memref<16x32xf32, #tpu.memory_space<vmem>>, vector<16x32xf32>,
    } else {
    }
    return
  }
  func.func @transform_0(%arg0: i32, %arg1: i32, %arg2: i32) -> (i32, i32) {
    %c0_i32 = arith.constant 0 : i32
    return %arg0, %arg2 : i32, i32
  }
  func.func @transform_1(%arg0: i32, %arg1: i32, %arg2: i32) -> (i32, i32) {
    %c0_i32 = arith.constant 0 : i32
    return %arg2, %arg1 : i32, i32
  }
  func.func @transform_2(%arg0: i32, %arg1: i32, %arg2: i32) -> (i32, i32) {
    %c0_i32 = arith.constant 0 : i32
    %c0_i32_0 = arith.constant 0 : i32
    return %c0_i32, %arg1 : i32, i32
  }
  func.func @transform_3(%arg0: i32, %arg1: i32, %arg2: i32) -> (i32, i32) {
    %c0_i32 = arith.constant 0 : i32
    return %arg0, %arg1 : i32, i32
  }
}

</mosaic_0001>

<llo_original>
// kernel: tpu_custom_call.1
$region0: #{tpu_custom_call.1}
  #allocation0 [shape = 'u32[]', space=smem, size = 0x4, offset = 0x4, fixed_abs, tag = 'smem constant byte address 0x4 - core index']
  #allocation1 [shape = 'u32[144,128]{1,0:T(1,128)}', space=vmem, size = 0x12000, scoped, tag = 'internal scratch']
  #allocation2 [shape = 'f32[16,32]{1,0:T(8,128)}', space=vmem, size = 0x2000, scoped, tag = 'scratch operand']
  %s0 = inlined_call_operand.hbm [shape: f32[16,16], index: 0, kind: input, shape index: {}]
  %s1 = inlined_call_operand.hbm [shape: bf16[16,32], index: 1, kind: input, shape index: {}]
  %s2 = inlined_call_operand.vmem [shape: f32[1,32], index: 2, kind: input, shape index: {}]
  %s3 = inlined_call_operand.hbm [shape: f32[16,32], index: 3, kind: output, shape index: {}]
  %s4 = sld [smem:[#allocation0]]
  $region38: #{tpu_custom_call.1} parent=0
    _
  %s6 = ssub.s32 1, %s4
  %s7 = scalar_select 0, %s6, %s4
  $region1: #{tpu_custom_call.1} parent=0
    #allocation3 [shape = 'u8[8192]{0}', space=vmem, size = 0x2000, scoped, tag = 'input window, operand 0, single buffered']
    #allocation4 [shape = 's32[1]{0}', space=sflag, size = 0x4, scoped, tag = 'scoped memory for tpu_custom_call.1']
    #allocation5 [shape = 's32[1]{0}', space=sflag, size = 0x4, scoped, tag = 'scoped memory for tpu_custom_call.1']
    #allocation6 [shape = 'u8[4096]{0}', space=vmem, size = 0x1000, scoped, tag = 'input window, operand 1, single buffered']
    #allocation7 [shape = 's32[1]{0}', space=sflag, size = 0x4, scoped, tag = 'scoped memory for tpu_custom_call.1']
    #allocation8 [shape = 'u8[8192]{0}', space=vmem, size = 0x2000, scoped, tag = 'output window, operand 0, single buffered']
    %8 = vsyncpa [#allocation4], 0
    %9 = vsyncpa [#allocation7], 0
    %10 = vsyncpa [#allocation5], 0
    // Predicated region
    $region2: #{tpu_custom_call.1} parent=1 // pred_check
      _
    $region3: #{tpu_custom_call.1} parent=1 // pred_check_branch
      %12 = sbr.rel (0) target = $region5
    $region4: #{tpu_custom_call.1} parent=1 // pred_region
      %s14 = ssub.s32 256, 256
      %15 = vsyncadd [#allocation4], %s14
      %s16 = sshll.u32 [#allocation3], 4
      %s17 = int_to_ptr.vmem [resolvable:$true] %s16
      %22 = dma.hbm_to_vmem [thread:$0]  %s0, 256, %s17, [#allocation4], 128, 128, 8
    $region5: #{tpu_custom_call.1} parent=1 // pred_fallthru
      _
    // Predicated region
    $region6: #{tpu_custom_call.1} parent=1 // pred_check
      _
    $region7: #{tpu_custom_call.1} parent=1 // pred_check_branch
      %24 = sbr.rel (0) target = $region9
    $region8: #{tpu_custom_call.1} parent=1 // pred_region
      %s26 = ssub.s32 128, 128
      %27 = vsyncadd [#allocation7], %s26
      %s28 = sshll.u32 [#allocation6], 4
      %s29 = int_to_ptr.vmem [resolvable:$true] %s28
      %34 = dma.hbm_to_vmem [thread:$0]  %s1, 128, %s29, [#allocation7], 64, 64, 4
    $region9: #{tpu_custom_call.1} parent=1 // pred_fallthru
      _
    // Predicated region
    $region10: #{tpu_custom_call.1} parent=1 // pred_check
      _
    $region11: #{tpu_custom_call.1} parent=1 // pred_check_branch
      %36 = sbr.rel (0) target = $region13
    $region12: #{tpu_custom_call.1} parent=1 // pred_region
      _
    $region13: #{tpu_custom_call.1} parent=1 // pred_fallthru
      _
    // Predicated region
    $region14: #{tpu_custom_call.1} parent=1 // pred_check
      _
    $region15: #{tpu_custom_call.1} parent=1 // pred_check_branch
      %38 = sbr.rel (0) target = $region17
    $region16: #{tpu_custom_call.1} parent=1 // pred_region
      %39 = dma.done [#allocation4], 256
    $region17: #{tpu_custom_call.1} parent=1 // pred_fallthru
      _
    // Predicated region
    $region18: #{tpu_custom_call.1} parent=1 // pred_check
      _
    $region19: #{tpu_custom_call.1} parent=1 // pred_check_branch
      %41 = sbr.rel (0) target = $region21
    $region20: #{tpu_custom_call.1} parent=1 // pred_region
      %42 = dma.done [#allocation7], 128
    $region21: #{tpu_custom_call.1} parent=1 // pred_fallthru
      _
    %p44 = scmp.eq.s32.totalorder 0, 0
    // Predicated region
    $region22: #{tpu_custom_call.1} parent=1 // pred_check
      %p45 = pneg %p44
    $region23: #{tpu_custom_call.1} parent=1 // pred_check_branch
      %47 = sbr.rel (%p45) target = $region25
    $region24: #{tpu_custom_call.1} parent=1 // pred_region
      %vm48 = vcmask 261120
      %49 = vst.msk [vmem:[#allocation2] sm:$0xff] %vm48, 0.0
      %50 = vst.msk [vmem:[#allocation2 + $0x8] sm:$0xff] %vm48, 0.0
    $region25: #{tpu_custom_call.1} parent=1 // pred_fallthru
      _
    %v51 = vld [vmem:[#allocation3] sm:$0xff]
    %v52 = vld [vmem:[#allocation3 + $0x8] sm:$0xff]
    %v53 = vpack.c.bf16 %v52, %v51
    %v54 = vld [vmem:[#allocation2] sm:$0xff]
    %v55 = vld [vmem:[#allocation2 + $0x8] sm:$0xff]
    %v56 = vld [vmem:[#allocation6] sm:$0xf]
    %v57 = vld [vmem:[#allocation6 + $0x4] sm:$0xf]
    %v60 = vunpack.c.l.b16 %v56
    %v61 = vunpack.c.l.b16 %v57
    %v62 = vpack.c.b16 %v61, %v60
    %vm64 = vcmask 130048
    %v66 = vsel %vm64, %v53, 0
    %68 = vmatprep.subr.bf16.mxu0 0
    %69 = vmatpush1.bf16.msra.mxu0 0
    %70 = vmatprep.subr.bf16.mxu0 0
    %71 = vmatpush1.bf16.msra.mxu0 0
    %72 = vmatprep.subr.bf16.mxu0 0
    %73 = vmatpush1.bf16.msra.mxu0 0
    %74 = vmatprep.subr.bf16.mxu0 0
    %75 = vmatpush1.bf16.msra.mxu0 0
    %76 = vmatprep.subr.bf16.mxu0 0
    %77 = vmatpush1.bf16.msra.mxu0 0
    %78 = vmatprep.subr.bf16.mxu0 0
    %79 = vmatpush1.bf16.msra.mxu0 0
    %80 = vmatprep.subr.bf16.mxu0 0
    %81 = vmatpush1.bf16.msra.mxu0 0
    %82 = vmatprep.subr.bf16.mxu0 0
    %83 = vmatpush1.bf16.msra.mxu0 %v62
    %84 = vmatprep.subr.bf16.mxu0 0
    %85 = vmatpush2.bf16.msra.mxu0 0
    %86 = vmatprep.subr.bf16.mxu0 0
    %87 = vmatpush2.bf16.msra.mxu0 0
    %88 = vmatprep.subr.bf16.mxu0 0
    %89 = vmatpush2.bf16.msra.mxu0 0
    %90 = vmatprep.subr.bf16.mxu0 0
    %91 = vmatpush2.bf16.msra.mxu0 0
    %92 = vmatprep.subr.bf16.mxu0 0
    %93 = vmatpush2.bf16.msra.mxu0 0
    %94 = vmatprep.subr.bf16.mxu0 0
    %95 = vmatpush2.bf16.msra.mxu0 0
    %96 = vmatprep.subr.bf16.mxu0 0
    %97 = vmatpush2.bf16.msra.mxu0 0
    %98 = vmatprep.subr.bf16.mxu0 0
    %99 = vmatpush2.bf16.msra.mxu0 0
    %100 = vmatprep.mubr.bf16.mxu0 0
    %101 = vmatmul.mubr.bf16.gmra.mxu0 %v66
    %v102 = vpop.f32.mrf.mxu0
    %v103 = vadd.f32 0.0, %v102
    %v104 = vpop.f32.mrf.mxu0
    %v105 = vpop.f32.mrf.mxu0
    %v106 = vadd.f32 0.0, %v105
    %v107 = vpop.f32.mrf.mxu0
    %108 = vdwg.mxu0
    %v109 = vadd.f32 %v54, %v103
    %v110 = vadd.f32 %v55, %v106
    %vm111 = vcmask 261120
    %112 = vst.msk [vmem:[#allocation2] sm:$0xff] %vm111, %v109
    %113 = vst.msk [vmem:[#allocation2 + $0x8] sm:$0xff] %vm111, %v110
    // Predicated region
    $region26: #{tpu_custom_call.1} parent=1 // pred_check
      %p114 = pneg %p44
    $region27: #{tpu_custom_call.1} parent=1 // pred_check_branch
      %116 = sbr.rel (%p114) target = $region29
    $region28: #{tpu_custom_call.1} parent=1 // pred_region
      %v117 = vld [vmem:[#allocation2] sm:$0xff]
      %v118 = vld [vmem:[#allocation2 + $0x8] sm:$0xff]
      %v119 = vld [vmem:[%s2] sm:$0x1]
      %v121 = vlaneseq
      %v122 = vshrl.u32 %v121, 7
      %v123 = vsub.s32 0, %v122
      %v124 = vrot.slane %v119, %v123
      %v126 = vadd.f32 %v117, %v124
      %v127 = vadd.f32 %v118, %v124
      %128 = vst.msk [vmem:[#allocation8] sm:$0xff] %vm111, %v126
      %129 = vst.msk [vmem:[#allocation8 + $0x8] sm:$0xff] %vm111, %v127
    $region29: #{tpu_custom_call.1} parent=1 // pred_fallthru
      _
    // Predicated region
    $region30: #{tpu_custom_call.1} parent=1 // pred_check
      _
    $region31: #{tpu_custom_call.1} parent=1 // pred_check_branch
      %131 = sbr.rel (0) target = $region33
    $region32: #{tpu_custom_call.1} parent=1 // pred_region
      %s133 = ssub.s32 256, 256
      %134 = vsyncadd [#allocation5], %s133
      %s135 = sshll.u32 [#allocation8], 4
      %s136 = int_to_ptr.vmem [resolvable:$true] %s135
      %141 = dma.vmem_to_hbm [thread:$0]  %s136, 256, %s3, [#allocation5], 128, 128, 8
    $region33: #{tpu_custom_call.1} parent=1 // pred_fallthru
      _
    // Predicated region
    $region34: #{tpu_custom_call.1} parent=1 // pred_check
      _
    $region35: #{tpu_custom_call.1} parent=1 // pred_check_branch
      %143 = sbr.rel (0) target = $region37
    $region36: #{tpu_custom_call.1} parent=1 // pred_region
      %144 = dma.done [#allocation5], 256
    $region37: #{tpu_custom_call.1} parent=1 // pred_fallthru
      _
    %145 = vsyncpa [#allocation4], 1
    %146 = vsyncpa [#allocation7], 1
    %147 = vsyncpa [#allocation5], 1

</llo_original>
